<compile_context>
chip_gen: v7x
topology: tpu7x:2x2x1
jax: 0.10.0
libtpu: 0.0.40
codegen_flags: <defaults>
</compile_context>

<pallas_src>
import math

import numpy as np
import jax
import jax.numpy as jnp
from jax.experimental import pallas as pl
from jax.experimental.pallas import tpu as pltpu


# ----------------------------------------------------------------------------
# Static size computation (exactly mirrors MinMaxResize.forward's Python math)
# ----------------------------------------------------------------------------
def _min_max_size(dim2, dim3, shorter, longer):
    # Note: the original code names x.shape[2] "w" and x.shape[3] "h".
    w, h = dim2, dim3
    scale = shorter / min(w, h)
    if h < w:
        newh, neww = float(shorter), scale * w
    else:
        newh, neww = scale * h, float(shorter)
    if max(newh, neww) > longer:
        scale = longer / max(newh, neww)
        newh = newh * scale
        neww = neww * scale
    newh, neww = int(newh + 0.5), int(neww + 0.5)
    newh, neww = newh // 32 * 32, neww // 32 * 32
    # torchvision F.resize(size=[neww, newh]) -> output (N, C, neww, newh)
    out_h, out_w = neww, newh
    return out_h, out_w


# ----------------------------------------------------------------------------
# Bicubic interpolation weight matrices (a = -0.75, align_corners=False,
# border replicate), computed once in numpy from static shapes.
# ----------------------------------------------------------------------------
def _cubic(t, a=-0.75):
    t = abs(t)
    if t <= 1.0:
        return (a + 2.0) * t ** 3 - (a + 3.0) * t ** 2 + 1.0
    elif t < 2.0:
        return a * t ** 3 - 5.0 * a * t ** 2 + 8.0 * a * t - 4.0 * a
    return 0.0


def _bicubic_weight_matrix(in_size, out_size):
    scale = in_size / out_size
    W = np.zeros((out_size, in_size), dtype=np.float32)
    for i in range(out_size):
        src = (i + 0.5) * scale - 0.5
        x0 = math.floor(src)
        frac = src - x0
        for k in range(-1, 3):
            idx = min(max(x0 + k, 0), in_size - 1)  # border replicate
            W[i, idx] += _cubic(frac - k)
    return W


# ----------------------------------------------------------------------------
# Pallas kernel: one (in_H, in_W) plane tile -> (tile_oH, out_W_pad) via two
# MXU matmuls: tmp = Wh_tile @ plane ; out = tmp @ Ww^T (pre-transposed).
# tmp is at most (tile_oh, in_W) -- kept small by the out_H tiling, so no
# explicit scratch is needed.
# ----------------------------------------------------------------------------
def _resize_kernel(x_ref, wh_ref, wwt_ref, o_ref):
    plane = x_ref[0]                                       # (in_H, in_W) bf16
    tmp = jnp.dot(wh_ref[...], plane,
                  preferred_element_type=jnp.float32)      # (tile_oh, in_W) f32
    out = jnp.dot(tmp.astype(jnp.bfloat16), wwt_ref[...],
                  preferred_element_type=jnp.float32)      # (tile_oh, out_W_pad)
    o_ref[0] = out.astype(o_ref.dtype)


def min_max_resize(x, shorter=800, longer=1333):
    """x: (N, C, H, W) float. Returns (N, C, out_H, out_W) float32."""
    n, c, in_h, in_w = x.shape
    out_h, out_w = _min_max_size(in_h, in_w, shorter, longer)
    out_w_pad = ((out_w + 127) // 128) * 128          # lane-dense output stores

    # Host-side weight construction: Wh dense, Ww pre-transposed + zero-padded.
    wh_np = _bicubic_weight_matrix(in_h, out_h)       # (out_H, in_H)
    ww_np = _bicubic_weight_matrix(in_w, out_w)       # (out_W, in_W)
    ww_t_np = np.zeros((in_w, out_w_pad), dtype=np.float32)
    ww_t_np[:, :out_w] = ww_np.T                      # (in_W, out_W_pad)

    wh = jnp.asarray(wh_np, dtype=jnp.bfloat16)
    ww_t = jnp.asarray(ww_t_np, dtype=jnp.bfloat16)

    b = n * c
    x_flat = x.reshape(b, in_h, in_w).astype(jnp.bfloat16)

    # Tile the output rows: bounds VMEM (wh tile, out tile, tmp) and gives a
    # second parallel axis for v7x's two TensorCores. tile_oh is a multiple of
    # 8 (out_h is a multiple of 32), so the (8,128) block constraint holds even
    # when the last tile is partial (Pallas masks the out-of-range rows).
    tile_oh = min(out_h, 256)
    n_oh = pl.cdiv(out_h, tile_oh)

    flops = 2 * b * (out_h * in_h * in_w + out_h * in_w * out_w_pad)
    bytes_accessed = (b * in_h * in_w * 2                 # bf16 planes in
                      + b * out_h * out_w_pad * 4         # f32 planes out
                      + out_h * in_h * 2                  # wh
                      + in_w * out_w_pad * 2)             # ww^T

    out_flat = pl.pallas_call(
        _resize_kernel,
        out_shape=jax.ShapeDtypeStruct((b, out_h, out_w_pad), jnp.float32),
        grid_spec=pltpu.PrefetchScalarGridSpec(
            num_scalar_prefetch=0,
            grid=(b, n_oh),
            in_specs=[
                # Image plane: constant across the inner (j) axis -> fetched
                # once per i; double-buffered across i.
                pl.BlockSpec((1, in_h, in_w), lambda i, j: (i, 0, 0)),
                # Row-weight tile: changes with j.
                pl.BlockSpec((tile_oh, in_h), lambda i, j: (j, 0)),
                # Pre-transposed column weights: constant block index for the
                # whole grid -> single buffer is enough.
                pl.BlockSpec((in_w, out_w_pad), lambda i, j: (0, 0),
                             pipeline_mode=pl.Buffered(1)),
            ],
            out_specs=pl.BlockSpec((1, tile_oh, out_w_pad),
                                   lambda i, j: (i, j, 0)),
        ),
        compiler_params=pltpu.CompilerParams(
            dimension_semantics=("parallel", "parallel"),
            vmem_limit_bytes=64 << 20),
        cost_estimate=pl.CostEstimate(flops=flops, transcendentals=0,
                                      bytes_accessed=bytes_accessed),
    )(x_flat, wh, ww_t)

    # Drop the lane padding and restore NCHW.
    return out_flat[:, :, :out_w].reshape(n, c, out_h, out_w)


# ----------------------------------------------------------------------------
# Pure-JAX f32 reference (same separable formulation) for a sanity check.
# ----------------------------------------------------------------------------
def _reference(x, shorter, longer):
    n, c, in_h, in_w = x.shape
    out_h, out_w = _min_max_size(in_h, in_w, shorter, longer)
    wh = jnp.asarray(_bicubic_weight_matrix(in_h, out_h))
    ww = jnp.asarray(_bicubic_weight_matrix(in_w, out_w))
    return jnp.einsum("oh,nchw,pw->ncop", wh, x.astype(jnp.float32), ww)


if __name__ == "__main__":
    key = jax.random.PRNGKey(0)
    x = jax.random.normal(key, (2, 4, 16, 16), dtype=jnp.float32)

    # Small, shape-consistent stand-ins for the (800, 1333) defaults so the
    # example stays tiny: 16x16 -> scale 2 -> 32x32 output.
    shorter, longer = 32, 48

    out = min_max_resize(x, shorter=shorter, longer=longer)
    out = jax.block_until_ready(out)

    ref = _reference(x, shorter, longer)
    assert out.shape == (2, 4, 32, 32), out.shape
    # bf16 matmul inputs -> loosen tolerance vs the f32 reference.
    np.testing.assert_allclose(np.asarray(out), np.asarray(ref),
                               rtol=3e-2, atol=3e-2)
    print("KERNEL_OK")
</pallas_src>

<mosaic_0001>
module attributes {stable_mosaic.version = 11 : i64} {
  func.func @_resize_kernel(%arg0: i32, %arg1: i32, %arg2: memref<1x16x16xbf16, #tpu.memory_space<vmem>>, %arg3: memref<32x16xbf16, #tpu.memory_space<vmem>>, %arg4: memref<16x128xbf16, #tpu.memory_space<vmem>>, %arg5: memref<1x32x128xf32, #tpu.memory_space<vmem>>) attributes {dimension_semantics = [#tpu.dimension_semantics<parallel>, #tpu.dimension_semantics<parallel>], iteration_bounds = array<i64: 8, 1>, scalar_prefetch = 0 : i64, scratch_operands = 0 : i64, tpu.core_type = #tpu.core_type<tc>, window_params = [{transform_indices = @transform_0, window_bounds = array<i64: 1, 16, 16>}, {transform_indices = @transform_1, window_bounds = array<i64: 32, 16>}, {pipeline_mode = #tpu.pipeline_mode<synchronous>, transform_indices = @transform_2, window_bounds = array<i64: 16, 128>}, {transform_indices = @transform_3, window_bounds = array<i64: 1, 32, 128>}]} {
    %c0 = arith.constant 0 : index
    %c0_0 = arith.constant 0 : index
    %c0_1 = arith.constant 0 : index
    %0 = vector.load %arg2[%c0, %c0_0, %c0_1] : memref<1x16x16xbf16, #tpu.memory_space<vmem>>, vector<1x16x16xbf16>
    %1 = vector.shape_cast %0 : vector<1x16x16xbf16> to vector<16x16xbf16>
    %c0_2 = arith.constant 0 : index
    %c0_3 = arith.constant 0 : index
    %2 = vector.load %arg3[%c0_2, %c0_3] : memref<32x16xbf16, #tpu.memory_space<vmem>>, vector<32x16xbf16>
    %cst = arith.constant dense<0.000000e+00> : vector<32x16xf32>
    %3 = tpu.matmul %2, %1, %cst {dimension_numbers = #tpu.dot_dimension_numbers<[1], [0], [0], [1], [0, 0, 1, 1], [], []>} : vector<32x16xbf16>, vector<16x16xbf16>, vector<32x16xf32> -> vector<32x16xf32>
    %4 = arith.truncf %3 : vector<32x16xf32> to vector<32x16xbf16>
    %c0_4 = arith.constant 0 : index
    %c0_5 = arith.constant 0 : index
    %5 = vector.load %arg4[%c0_4, %c0_5] : memref<16x128xbf16, #tpu.memory_space<vmem>>, vector<16x128xbf16>
    %cst_6 = arith.constant dense<0.000000e+00> : vector<32x128xf32>
    %6 = tpu.matmul %4, %5, %cst_6 {dimension_numbers = #tpu.dot_dimension_numbers<[1], [0], [0], [1], [0, 0, 1, 1], [], []>} : vector<32x16xbf16>, vector<16x128xbf16>, vector<32x128xf32> -> vector<32x128xf32>
    %c0_7 = arith.constant 0 : index
    %c0_8 = arith.constant 0 : index
    %c0_9 = arith.constant 0 : index
    %7 = vector.load %arg5[%c0_7, %c0_8, %c0_9] : memref<1x32x128xf32, #tpu.memory_space<vmem>>, vector<1x32x128xf32>
    %8 = vector.shape_cast %7 : vector<1x32x128xf32> to vector<32x128xf32>
    %9 = vector.shape_cast %6 : vector<32x128xf32> to vector<1x32x128xf32>
    tpu.vector_store %arg5[%c0_7, %c0_8, %c0_9], %9 {strides = array<i32>} : memref<1x32x128xf32, #tpu.memory_space<vmem>>, vector<1x32x128xf32>,
    return
  }
  func.func @transform_0(%arg0: i32, %arg1: i32) -> (i32, i32, i32) {
    %c0_i32 = arith.constant 0 : i32
    %c0_i32_0 = arith.constant 0 : i32
    %c0_i32_1 = arith.constant 0 : i32
    return %arg0, %c0_i32, %c0_i32_0 : i32, i32, i32
  }
  func.func @transform_1(%arg0: i32, %arg1: i32) -> (i32, i32) {
    %c0_i32 = arith.constant 0 : i32
    %c0_i32_0 = arith.constant 0 : i32
    return %arg1, %c0_i32 : i32, i32
  }
  func.func @transform_2(%arg0: i32, %arg1: i32) -> (i32, i32) {
    %c0_i32 = arith.constant 0 : i32
    %c0_i32_0 = arith.constant 0 : i32
    %c0_i32_1 = arith.constant 0 : i32
    return %c0_i32, %c0_i32_0 : i32, i32
  }
  func.func @transform_3(%arg0: i32, %arg1: i32) -> (i32, i32, i32) {
    %c0_i32 = arith.constant 0 : i32
    %c0_i32_0 = arith.constant 0 : i32
    return %arg0, %arg1, %c0_i32 : i32, i32, i32
  }
}

</mosaic_0001>

<llo_original>
// kernel: tpu_custom_call.1
$region0: #{tpu_custom_call.1}
  #allocation0 [shape = 'u32[]', space=smem, size = 0x4, offset = 0x4, fixed_abs, tag = 'smem constant byte address 0x4 - core index']
  #allocation1 [shape = 'u32[144,128]{1,0:T(1,128)}', space=vmem, size = 0x12000, scoped, tag = 'internal scratch']
  %s0 = inlined_call_operand.hbm [shape: bf16[8,16,16], index: 0, kind: input, shape index: {}]
  %s1 = inlined_call_operand.hbm [shape: bf16[32,16], index: 1, kind: input, shape index: {}]
  %s2 = inlined_call_operand.hbm [shape: bf16[16,128], index: 2, kind: input, shape index: {}]
  %s3 = inlined_call_operand.hbm [shape: f32[8,32,128], index: 3, kind: output, shape index: {}]
  %s4 = sld [smem:[#allocation0]]
  $region57: #{tpu_custom_call.1} parent=0
    _
  %s6 = ssub.s32 1, %s4
  %s7 = scalar_select 0, %s6, %s4
  $region1: #{tpu_custom_call.1} parent=0
    #allocation2 [shape = 'u8[8192]{0}', space=vmem, size = 0x2000, scoped, tag = 'input window, operand 0']
    #allocation3 [shape = 's32[2]{0}', space=sflag, size = 0x8, scoped, tag = 'scoped memory for tpu_custom_call.1']
    #allocation4 [shape = 's32[2]{0}', space=sflag, size = 0x8, scoped, tag = 'scoped memory for tpu_custom_call.1']
    #allocation5 [shape = 'u8[8192]{0}', space=vmem, size = 0x2000, scoped, tag = 'input window, operand 1, single buffered']
    #allocation6 [shape = 's32[1]{0}', space=sflag, size = 0x4, scoped, tag = 'scoped memory for tpu_custom_call.1']
    #allocation7 [shape = 'u8[4096]{0}', space=vmem, size = 0x1000, scoped, tag = 'input window, operand 2, single buffered']
    #allocation8 [shape = 'u8[32768]{0}', space=vmem, size = 0x8000, scoped, tag = 'output window, operand 0']
    %8 = vsyncpa [#allocation3], 0
    %s9 = scalar_lea.sflag [#allocation3], 1
    %10 = vsyncpa %s9, 0
    %11 = vsyncpa [#allocation6], 0
    %12 = vsyncpa [#allocation4], 0
    %s13 = scalar_lea.sflag [#allocation4], 1
    %14 = vsyncpa %s13, 0
    loop: start=0, step=1, limit=10
    $region2: #{tpu_custom_call.1} parent=1 // loop_pre_header
      _
    $region3: #{tpu_custom_call.1} parent=1 // loop_header
      %s16 = sphi 0, %s20
      %p17 = scmp.ge.s32.totalorder %s16, 10
      %s23 = sphi 0, %s35
      %s24 = sphi 0, %s31
      %s25 = sphi 0, %s23
      %s26 = sphi 0, %s24
      %s27 = sphi 0, %s25
      %s28 = sphi 0, %s26
      %s38 = sphi 0, %s40
      %s41 = sphi 0, %s38
      %s42 = sphi 0, %s41
      %s58 = sphi 0, %s42
      %s64 = sphi 0, %s66
      %s67 = sphi 0, %s64
      %s68 = sphi 0, %s67
      %s84 = sphi 0, %s68
      %s88 = sphi 0, %s88
      %s90 = sphi 0, %s88
      %s91 = sphi 0, %s90
      %s105 = sphi 0, %s91
      %s113 = sphi 0, %s115
      %s116 = sphi 0, %s113
      %s117 = sphi 0, %s116
      %s133 = sphi 0, %s117
    $region4: #{tpu_custom_call.1} parent=1 // loop_header_branch
      %19 = sbr.rel (%p17) target = $region8
    $region5: #{tpu_custom_call.1} parent=1 // loop_body
      %s21 = ssub.s32 %s16, 1
      %s22 = ssub.s32 %s16, 2
      %s29 = sadd.s32 1, %s24
      %p30 = scmp.ge.s32.totalorder %s29, 1
      %s31 = scalar_select %p30, 0, %s29
      %s32 = sadd.s32 1, %s23
      %s33 = scalar_select %p30, %s32, %s23
      %p34 = scmp.ge.s32.totalorder %s33, 8
      %s35 = scalar_select %p34, 0, %s33
      %s36 = ssub.s32 %s23, %s35
      %p37 = scmp.eq.s32.totalorder %s36, 0
      %s39 = sadd.s32 %s38, 1
      %s40 = scalar_select %p37, %s38, %s39
      %p43 = pneg %p37
      %p44 = scmp.eq.s32.totalorder %s16, 7
      %p45 = por %p43, %p44
      %p46 = scmp.ne.s32.totalorder %s38, %s41
      %p47 = scmp.eq.s32.totalorder %s16, 0
      %p48 = por %p46, %p47
      %p49 = scmp.ne.s32.totalorder %s38, %s41
      %p50 = scmp.eq.s32.totalorder %s21, 7
      %p51 = por %p49, %p50
      %p52 = scmp.ne.s32.totalorder %s41, %s42
      %p53 = scmp.eq.s32.totalorder %s21, 0
      %p54 = por %p52, %p53
      %p55 = scmp.ne.s32.totalorder %s41, %s42
      %p56 = scmp.eq.s32.totalorder %s22, 7
      %p57 = por %p55, %p56
      %p59 = scmp.ne.s32.totalorder %s42, %s58
      %p60 = scmp.eq.s32.totalorder %s22, 0
      %p61 = por %p59, %p60
      %s62 = ssub.s32 %s24, %s31
      %p63 = scmp.eq.s32.totalorder %s62, 0
      %s65 = sadd.s32 %s64, 1
      %s66 = scalar_select %p63, %s64, %s65
      %p69 = pneg %p63
      %p70 = scmp.eq.s32.totalorder %s16, 7
      %p71 = por %p69, %p70
      %p72 = scmp.ne.s32.totalorder %s64, %s67
      %p73 = scmp.eq.s32.totalorder %s16, 0
      %p74 = por %p72, %p73
      %p75 = scmp.ne.s32.totalorder %s64, %s67
      %p76 = scmp.eq.s32.totalorder %s21, 7
      %p77 = por %p75, %p76
      %p78 = scmp.ne.s32.totalorder %s67, %s68
      %p79 = scmp.eq.s32.totalorder %s21, 0
      %p80 = por %p78, %p79
      %p81 = scmp.ne.s32.totalorder %s67, %s68
      %p82 = scmp.eq.s32.totalorder %s22, 7
      %p83 = por %p81, %p82
      %p85 = scmp.ne.s32.totalorder %s68, %s84
      %p86 = scmp.eq.s32.totalorder %s22, 0
      %p87 = por %p85, %p86
      %s89 = sadd.s32 %s88, 1
      %p92 = scmp.eq.s32.totalorder %s16, 7
      %p93 = scmp.ne.s32.totalorder %s88, %s90
      %p94 = scmp.eq.s32.totalorder %s16, 0
      %p95 = por %p93, %p94
      %p96 = scmp.ne.s32.totalorder %s88, %s90
      %p97 = scmp.eq.s32.totalorder %s21, 7
      %p98 = por %p96, %p97
      %p99 = scmp.ne.s32.totalorder %s90, %s91
      %p100 = scmp.eq.s32.totalorder %s21, 0
      %p101 = por %p99, %p100
      %p102 = scmp.ne.s32.totalorder %s90, %s91
      %p103 = scmp.eq.s32.totalorder %s22, 7
      %p104 = por %p102, %p103
      %p106 = scmp.ne.s32.totalorder %s91, %s105
      %p107 = scmp.eq.s32.totalorder %s22, 0
      %p108 = por %p106, %p107
      %s109 = ssub.s32 %s23, %s35
      %s110 = ssub.s32 %s24, %s31
      %s111 = sor.u32 %s109, %s110
      %p112 = scmp.eq.s32.totalorder %s111, 0
      %s114 = sadd.s32 %s113, 1
      %s115 = scalar_select %p112, %s113, %s114
      %p118 = pneg %p112
      %p119 = scmp.eq.s32.totalorder %s16, 7
      %p120 = por %p118, %p119
      %p121 = scmp.ne.s32.totalorder %s113, %s116
      %p122 = scmp.eq.s32.totalorder %s16, 0
      %p123 = por %p121, %p122
      %p124 = scmp.ne.s32.totalorder %s113, %s116
      %p125 = scmp.eq.s32.totalorder %s21, 7
      %p126 = por %p124, %p125
      %p127 = scmp.ne.s32.totalorder %s116, %s117
      %p128 = scmp.eq.s32.totalorder %s21, 0
      %p129 = por %p127, %p128
      %p130 = scmp.ne.s32.totalorder %s116, %s117
      %p131 = scmp.eq.s32.totalorder %s22, 7
      %p132 = por %p130, %p131
      %p134 = scmp.ne.s32.totalorder %s117, %s133
      %p135 = scmp.eq.s32.totalorder %s22, 0
      %p136 = por %p134, %p135
      %p137 = scmp.le.s32.totalorder 1, %s16
      %p138 = scmp.lt.s32.totalorder %s16, 9
      %p139 = pnand %p137, %p138
      %p140 = pneg %p139
      // Predicated region
      $region9: #{tpu_custom_call.1} parent=5 // pred_check
        _
      $region10: #{tpu_custom_call.1} parent=5 // pred_check_branch
        %142 = sbr.rel (%p139) target = $region12
      $region11: #{tpu_custom_call.1} parent=5 // pred_region
        %s143 = ssub.s32 %s16, 1
        // Predicated region
        $region13: #{tpu_custom_call.1} parent=11 // pred_check
          %p144 = pneg %p80
        $region14: #{tpu_custom_call.1} parent=11 // pred_check_branch
          %146 = sbr.rel (%p144) target = $region16
        $region15: #{tpu_custom_call.1} parent=11 // pred_region
          %s147 = smul.u32 4, %s26
          %s149 = ssub.s32 256, 256
          %150 = vsyncadd [#allocation6], %s149
          %s151 = smul.addr %s147, 64
          %s152 = scalar_lea.hbm %s1, %s151
          %s153 = sshll.u32 [#allocation5], 4
          %s154 = int_to_ptr.vmem [resolvable:$true] %s153
          %159 = dma.hbm_to_vmem [thread:$0]  %s152, 256, %s154, [#allocation6], 64, 64, 4
        $region16: #{tpu_custom_call.1} parent=11 // pred_fallthru
          _
        // Predicated region
        $region17: #{tpu_custom_call.1} parent=11 // pred_check
          %p160 = pneg %p101
        $region18: #{tpu_custom_call.1} parent=11 // pred_check_branch
          %162 = sbr.rel (%p160) target = $region20
        $region19: #{tpu_custom_call.1} parent=11 // pred_region
          %s164 = ssub.s32 128, 128
          %165 = vsyncadd [#allocation6], %s164
          %s166 = sshll.u32 [#allocation7], 4
          %s167 = int_to_ptr.vmem [resolvable:$true] %s166
          %172 = dma.hbm_to_vmem [thread:$0]  %s2, 128, %s167, [#allocation6], 64, 64, 4
        $region20: #{tpu_custom_call.1} parent=11 // pred_fallthru
          _
      $region12: #{tpu_custom_call.1} parent=5 // pred_fallthru
        _
      %p173 = scmp.lt.s32.totalorder %s16, 8
      // Predicated region
      $region21: #{tpu_custom_call.1} parent=5 // pred_check
        %p174 = pneg %p173
      $region22: #{tpu_custom_call.1} parent=5 // pred_check_branch
        %176 = sbr.rel (%p174) target = $region24
      $region23: #{tpu_custom_call.1} parent=5 // pred_region
        // Predicated region
        $region25: #{tpu_custom_call.1} parent=23 // pred_check
          %p177 = pneg %p48
        $region26: #{tpu_custom_call.1} parent=23 // pred_check_branch
          %179 = sbr.rel (%p177) target = $region28
        $region27: #{tpu_custom_call.1} parent=23 // pred_region
          %s180 = sand.u32 %s38, 1
          %s181 = scalar_lea.sflag [#allocation3], %s180
          %s182 = sand.u32 %s38, 1
          %s183 = smul.addr %s182, 8
          %s184 = scalar_lea.vmem [#allocation2], %s183
          %s186 = ssub.s32 128, 128
          %187 = vsyncadd %s181, %s186
          %s188 = smul.addr %s23, 2
          %s189 = smul.addr %s188, 64
          %s190 = scalar_lea.hbm %s0, %s189
          %s191 = sshll.u32 %s184, 4
          %s192 = int_to_ptr.vmem [resolvable:$true] %s191
          %197 = dma.hbm_to_vmem [thread:$0]  %s190, 128, %s192, %s181, 64, 64, 4
        $region28: #{tpu_custom_call.1} parent=23 // pred_fallthru
          _
      $region24: #{tpu_custom_call.1} parent=5 // pred_fallthru
        _
      %p198 = scmp.le.s32.totalorder 1, %s16
      %p199 = scmp.lt.s32.totalorder %s16, 9
      %p200 = pnand %p198, %p199
      %p201 = pneg %p200
      // Predicated region
      $region29: #{tpu_custom_call.1} parent=5 // pred_check
        _
      $region30: #{tpu_custom_call.1} parent=5 // pred_check_branch
        %203 = sbr.rel (%p200) target = $region32
      $region31: #{tpu_custom_call.1} parent=5 // pred_region
        %s204 = ssub.s32 %s16, 1
        %s205 = sand.u32 %s41, 1
        %s206 = scalar_lea.sflag [#allocation3], %s205
        %s207 = sand.u32 %s41, 1
        %s208 = smul.addr %s207, 8
        %s209 = scalar_lea.vmem [#allocation2], %s208
        // Predicated region
        $region33: #{tpu_custom_call.1} parent=31 // pred_check
          %p210 = pneg %p54
        $region34: #{tpu_custom_call.1} parent=31 // pred_check_branch
          %212 = sbr.rel (%p210) target = $region36
        $region35: #{tpu_custom_call.1} parent=31 // pred_region
          %213 = dma.done %s206, 128
        $region36: #{tpu_custom_call.1} parent=31 // pred_fallthru
          _
        // Predicated region
        $region37: #{tpu_custom_call.1} parent=31 // pred_check
          %p214 = pneg %p80
        $region38: #{tpu_custom_call.1} parent=31 // pred_check_branch
          %216 = sbr.rel (%p214) target = $region40
        $region39: #{tpu_custom_call.1} parent=31 // pred_region
          %217 = dma.done [#allocation6], 256
        $region40: #{tpu_custom_call.1} parent=31 // pred_fallthru
          _
        // Predicated region
        $region41: #{tpu_custom_call.1} parent=31 // pred_check
          %p218 = pneg %p101
        $region42: #{tpu_custom_call.1} parent=31 // pred_check_branch
          %220 = sbr.rel (%p218) target = $region44
        $region43: #{tpu_custom_call.1} parent=31 // pred_region
          %221 = dma.done [#allocation6], 128
        $region44: #{tpu_custom_call.1} parent=31 // pred_fallthru
          _
        %s222 = sand.u32 %s41, 1
        %s223 = scalar_lea.sflag [#allocation3], %s222
        %s224 = sand.u32 %s41, 1
        %s225 = smul.addr %s224, 8
        %s226 = scalar_lea.vmem [#allocation2], %s225
        %p227 = pneg %p54
        %p228 = pneg %p51
        %p229 = pneg %p80
        %p230 = pneg %p77
        %p231 = pneg %p101
        %p232 = pneg %p98
        %p233 = pneg %p129
        %p234 = pneg %p126
        %s235 = sand.u32 %s116, 1
        %s236 = scalar_lea.sflag [#allocation4], %s235
        %s237 = sand.u32 %s116, 1
        %s238 = smul.addr %s237, 32
        %s239 = scalar_lea.vmem [#allocation8], %s238
        %s240 = smul.u32 4, %s26
        %s241 = smul.u32 4, %s26
        %v243 = vld [vmem:[%s209] sm:$0xf]
        %v244 = vld [vmem:[%s209 + $0x4] sm:$0xf]
        %v245 = vld [vmem:[#allocation5] sm:$0xf]
        %v246 = vld [vmem:[#allocation5 + $0x4] sm:$0xf]
        %v247 = vld [vmem:[#allocation5 + $0x8] sm:$0xf]
        %v248 = vld [vmem:[#allocation5 + $0xc] sm:$0xf]
        %v253 = vunpack.c.l.b16 %v245
        %v254 = vunpack.c.l.b16 %v246
        %v255 = vunpack.c.l.b16 %v247
        %v256 = vunpack.c.l.b16 %v248
        %v257 = vpack.c.b16 %v254, %v253
        %v258 = vpack.c.b16 %v256, %v255
        %v261 = vunpack.c.l.b16 %v243
        %v262 = vunpack.c.l.b16 %v244
        %v263 = vpack.c.b16 %v262, %v261
        %vm265 = vcmask 130048
        %v267 = vsel %vm265, %v257, 0
        %v270 = vsel %vm265, %v258, 0
        %272 = vmatprep.subr.bf16.mxu0 0
        %273 = vmatpush1.bf16.msra.mxu0 %v263
        %274 = vmatprep.subr.bf16.mxu0 0
        %275 = vmatpush1.bf16.msra.mxu0 0
        %276 = vmatprep.subr.bf16.mxu0 0
        %277 = vmatpush1.bf16.msra.mxu0 0
        %278 = vmatprep.subr.bf16.mxu0 0
        %279 = vmatpush1.bf16.msra.mxu0 0
        %280 = vmatprep.subr.bf16.mxu0 0
        %281 = vmatpush1.bf16.msra.mxu0 0
        %282 = vmatprep.subr.bf16.mxu0 0
        %283 = vmatpush1.bf16.msra.mxu0 0
        %284 = vmatprep.subr.bf16.mxu0 0
        %285 = vmatpush1.bf16.msra.mxu0 0
        %286 = vmatprep.subr.bf16.mxu0 0
        %287 = vmatpush1.bf16.msra.mxu0 0
        %288 = vmatprep.subr.bf16.mxu0 0
        %289 = vmatpush1.bf16.msra.mxu0 0
        %290 = vmatprep.subr.bf16.mxu0 0
        %291 = vmatpush1.bf16.msra.mxu0 0
        %292 = vmatprep.subr.bf16.mxu0 0
        %293 = vmatpush1.bf16.msra.mxu0 0
        %294 = vmatprep.subr.bf16.mxu0 0
        %295 = vmatpush1.bf16.msra.mxu0 0
        %296 = vmatprep.subr.bf16.mxu0 0
        %297 = vmatpush1.bf16.msra.mxu0 0
        %298 = vmatprep.subr.bf16.mxu0 0
        %299 = vmatpush1.bf16.msra.mxu0 0
        %300 = vmatprep.subr.bf16.mxu0 0
        %301 = vmatpush1.bf16.msra.mxu0 0
        %302 = vmatprep.subr.bf16.mxu0 0
        %303 = vmatpush1.bf16.msra.mxu0 0
        %304 = vmatprep.mubr.bf16.mxu0 0
        %305 = vmatmul.mubr.bf16.gmra.mrb[0].mxu0 %v267
        %v306 = vpop.f32.mrb[0].mxu0
        %v307 = vadd.f32 0.0, %v306
        %v308 = vpop.f32.mrb[0].mxu0
        %v309 = vpop.f32.mrb[0].mxu0
        %v310 = vadd.f32 0.0, %v309
        %v311 = vpop.f32.mrb[0].mxu0
        %312 = vmatprep.mubr.bf16.mxu0 0
        %313 = vmatmul.mubr.bf16.gmra.mrb[0].mxu0 %v270
        %v314 = vpop.f32.mrb[0].mxu0
        %v315 = vadd.f32 0.0, %v314
        %v316 = vpop.f32.mrb[0].mxu0
        %v317 = vpop.f32.mrb[0].mxu0
        %v318 = vadd.f32 0.0, %v317
        %v319 = vpop.f32.mrb[0].mxu0
        %320 = vdwg.mxu0
        %v321 = vpack.c.bf16 %v310, %v307
        %v322 = vpack.c.bf16 %v318, %v315
        %v323 = vld [vmem:[#allocation7] sm:$0xf]
        %v324 = vld [vmem:[#allocation7 + $0x4] sm:$0xf]
        %v327 = vunpack.c.l.b16 %v323
        %v328 = vunpack.c.l.b16 %v324
        %v329 = vpack.c.b16 %v328, %v327
        %v332 = vsel %vm265, %v321, 0
        %v335 = vsel %vm265, %v322, 0
        %337 = vmatprep.subr.bf16.mxu0 0
        %338 = vmatpush1.bf16.msra.mxu0 %v329
        %339 = vmatprep.subr.bf16.mxu0 0
        %340 = vmatpush1.bf16.msra.mxu0 0
        %341 = vmatprep.subr.bf16.mxu0 0
        %342 = vmatpush1.bf16.msra.mxu0 0
        %343 = vmatprep.subr.bf16.mxu0 0
        %344 = vmatpush1.bf16.msra.mxu0 0
        %345 = vmatprep.subr.bf16.mxu0 0
        %346 = vmatpush1.bf16.msra.mxu0 0
        %347 = vmatprep.subr.bf16.mxu0 0
        %348 = vmatpush1.bf16.msra.mxu0 0
        %349 = vmatprep.subr.bf16.mxu0 0
        %350 = vmatpush1.bf16.msra.mxu0 0
        %351 = vmatprep.subr.bf16.mxu0 0
        %352 = vmatpush1.bf16.msra.mxu0 0
        %353 = vmatprep.subr.bf16.mxu0 0
        %354 = vmatpush1.bf16.msra.mxu0 0
        %355 = vmatprep.subr.bf16.mxu0 0
        %356 = vmatpush1.bf16.msra.mxu0 0
        %357 = vmatprep.subr.bf16.mxu0 0
        %358 = vmatpush1.bf16.msra.mxu0 0
        %359 = vmatprep.subr.bf16.mxu0 0
        %360 = vmatpush1.bf16.msra.mxu0 0
        %361 = vmatprep.subr.bf16.mxu0 0
        %362 = vmatpush1.bf16.msra.mxu0 0
        %363 = vmatprep.subr.bf16.mxu0 0
        %364 = vmatpush1.bf16.msra.mxu0 0
        %365 = vmatprep.subr.bf16.mxu0 0
        %366 = vmatpush1.bf16.msra.mxu0 0
        %367 = vmatprep.subr.bf16.mxu0 0
        %368 = vmatpush1.bf16.msra.mxu0 0
        %369 = vmatprep.mubr.bf16.mxu0 0
        %370 = vmatmul.mubr.bf16.gmra.mrb[0].mxu0 %v332
        %v371 = vpop.f32.mrb[0].mxu0
        %v372 = vadd.f32 0.0, %v371
        %v373 = vpop.f32.mrb[0].mxu0
        %v374 = vpop.f32.mrb[0].mxu0
        %v375 = vadd.f32 0.0, %v374
        %v376 = vpop.f32.mrb[0].mxu0
        %377 = vmatprep.mubr.bf16.mxu0 0
        %378 = vmatmul.mubr.bf16.gmra.mrb[0].mxu0 %v335
        %v379 = vpop.f32.mrb[0].mxu0
        %v380 = vadd.f32 0.0, %v379
        %v381 = vpop.f32.mrb[0].mxu0
        %v382 = vpop.f32.mrb[0].mxu0
        %v383 = vadd.f32 0.0, %v382
        %v384 = vpop.f32.mrb[0].mxu0
        %385 = vdwg.mxu0
        %386 = vst [vmem:[%s239] sm:$0xff] %v372
        %387 = vst [vmem:[%s239 + $0x8] sm:$0xff] %v375
        %388 = vst [vmem:[%s239 + $0x10] sm:$0xff] %v380
        %389 = vst [vmem:[%s239 + $0x18] sm:$0xff] %v383
        %s390 = sand.u32 %s116, 1
        %s391 = scalar_lea.sflag [#allocation4], %s390
        %s392 = sand.u32 %s116, 1
        %s393 = smul.addr %s392, 32
        %s394 = scalar_lea.vmem [#allocation8], %s393
        // Predicated region
        $region45: #{tpu_custom_call.1} parent=31 // pred_check
          %p395 = pneg %p126
        $region46: #{tpu_custom_call.1} parent=31 // pred_check_branch
          %397 = sbr.rel (%p395) target = $region48
        $region47: #{tpu_custom_call.1} parent=31 // pred_region
          %s398 = smul.u32 4, %s26
          %s400 = ssub.s32 512, 512
          %401 = vsyncadd %s391, %s400
          %s402 = smul.addr %s25, 4
          %s403 = sadd.s32 %s398, %s402
          %s404 = smul.addr %s403, 128
          %s405 = scalar_lea.hbm %s3, %s404
          %s406 = sshll.u32 %s394, 4
          %s407 = int_to_ptr.vmem [resolvable:$true] %s406
          %412 = dma.vmem_to_hbm [thread:$0]  %s407, 512, %s405, %s391, 128, 128, 8
        $region48: #{tpu_custom_call.1} parent=31 // pred_fallthru
          _
      $region32: #{tpu_custom_call.1} parent=5 // pred_fallthru
        _
      %p413 = scmp.le.s32.totalorder 2, %s16
      // Predicated region
      $region49: #{tpu_custom_call.1} parent=5 // pred_check
        %p414 = pneg %p413
      $region50: #{tpu_custom_call.1} parent=5 // pred_check_branch
        %416 = sbr.rel (%p414) target = $region52
      $region51: #{tpu_custom_call.1} parent=5 // pred_region
        %s417 = ssub.s32 %s16, 2
        // Predicated region
        $region53: #{tpu_custom_call.1} parent=51 // pred_check
          %p418 = pneg %p132
        $region54: #{tpu_custom_call.1} parent=51 // pred_check_branch
          %420 = sbr.rel (%p418) target = $region56
        $region55: #{tpu_custom_call.1} parent=51 // pred_region
          %s421 = sand.u32 %s117, 1
          %s422 = scalar_lea.sflag [#allocation4], %s421
          %s423 = sand.u32 %s117, 1
          %s424 = smul.addr %s423, 32
          %s425 = scalar_lea.vmem [#allocation8], %s424
          %426 = dma.done %s422, 512
        $region56: #{tpu_custom_call.1} parent=51 // pred_fallthru
          _
      $region52: #{tpu_custom_call.1} parent=5 // pred_fallthru
        _
    $region6: #{tpu_custom_call.1} parent=1 // loop_footer
      %s20 = sadd.s32 1, %s16
    $region7: #{tpu_custom_call.1} parent=1 // loop_footer_branch
      %15 = sbr.rel target = $region3
    $region8: #{tpu_custom_call.1} parent=1 // loop_exit
      _
    %427 = vsyncpa [#allocation3], 1
    %s428 = scalar_lea.sflag [#allocation3], 1
    %429 = vsyncpa %s428, 1
    %430 = vsyncpa [#allocation6], 1
    %431 = vsyncpa [#allocation4], 1
    %s432 = scalar_lea.sflag [#allocation4], 1
    %433 = vsyncpa %s432, 1

</llo_original>
